<compile_context>
chip_gen: v5e
topology: v5e:2x2
jax: 0.10.0
libtpu: 0.0.40
codegen_flags: <defaults>
</compile_context>

<pallas_src>
import functools

import jax
import jax.numpy as jnp
from jax.experimental import pallas as pl
from jax.experimental.pallas import tpu as pltpu

_LANE = 128  # lane width (last dim)


def _round_up(n, m):
    return ((n + m - 1) // m) * m


def _fused_mlp_kernel(x_ref, *refs, num_hidden):
    """Whole MLP on VMEM-resident tiles.

    refs = (w0, b0, w1, b1, ..., wL, bL, o_ref)
      x_ref : (B, F)            f32  (cast to bf16 in-kernel)
      w_i   : (K_i, N_i)        bf16 (unpadded; last layer padded to 128 lanes)
      b_i   : (1, N_i)          f32
      o_ref : (B, N_last_pad)   f32  (lane-dense)
    """
    o_ref = refs[-1]
    wb = refs[:-1]

    # In-kernel cast: feeds the MXU, hides under the weight DMA.
    h = x_ref[...].astype(jnp.bfloat16)
    for i in range(num_hidden + 1):
        w = wb[2 * i][...]
        b = wb[2 * i + 1][...]
        # MXU matmul in bf16, f32 accumulation; bias add in f32 on the VPU.
        y = jnp.dot(h, w, preferred_element_type=jnp.float32) + b
        if i < num_hidden:
            # LeakyReLU(0.2) in f32 (compare/select on VPU).
            y = jnp.where(y > 0, y, 0.2 * y)
            # Dropout(0.5): inference-mode identity.
            h = y.astype(jnp.bfloat16)  # next MXU operand
        else:
            # Sigmoid: exact math (exp on EUP, exact divide). One vreg of work.
            o_ref[...] = (1.0 / (1.0 + jnp.exp(-y))).astype(o_ref.dtype)


def fused_mlp(x, params, num_hidden):
    """x: (B, F) f32; params: [(W bf16 (K_i, N_i), b f32 (1, N_i))].

    Last layer's (W, b) are lane-padded to a multiple of 128 so the output
    store is unmasked; the real columns are sliced out by the caller.
    """
    B, F = x.shape
    n_out = params[-1][0].shape[1]

    inputs = [x]
    in_specs = [pl.BlockSpec((B, F), lambda: (0, 0))]
    flops = 0
    bytes_accessed = x.size * x.dtype.itemsize
    for w, b in params:
        inputs += [w, b]
        in_specs += [
            pl.BlockSpec(w.shape, lambda: (0, 0)),
            pl.BlockSpec(b.shape, lambda: (0, 0)),
        ]
        flops += 2 * B * w.shape[0] * w.shape[1]
        bytes_accessed += w.size * 2 + b.size * 4  # bf16 W, f32 b
    bytes_accessed += B * n_out * 4                # f32 output
    transcendentals = B * n_out                    # exp in sigmoid

    kernel = functools.partial(_fused_mlp_kernel, num_hidden=num_hidden)
    return pl.pallas_call(
        kernel,
        out_shape=jax.ShapeDtypeStruct((B, n_out), jnp.float32),
        # Tiny problem: every operand is a single full-array VMEM block
        # (block_shape == full array dims satisfies the (8,128) rule).
        in_specs=in_specs,
        out_specs=pl.BlockSpec((B, n_out), lambda: (0, 0)),
        compiler_params=pltpu.CompilerParams(dimension_semantics=()),
        cost_estimate=pl.CostEstimate(
            flops=int(flops),
            transcendentals=int(transcendentals),
            bytes_accessed=int(bytes_accessed),
        ),
    )(*inputs)


class DiscriminatorPallas:
    """JAX/Pallas port of the PyTorch Discriminator module."""

    def __init__(self, input_size, output_size, hidden_layers, key):
        self.input_size = int(input_size)
        self.output_size = int(output_size)
        self.num_hidden = len(hidden_layers)

        self.logical = []  # (W f32 (in,out), b f32 (out,)) -- for the reference
        self.kernel_params = []  # (W bf16, b f32 (1,N)) -- kernel inputs

        sizes = list(hidden_layers) + [self.output_size]
        layer_size = self.input_size
        for idx, out_size in enumerate(sizes):
            key, kw, kb = jax.random.split(key, 3)
            # PyTorch nn.Linear default init: U(-1/sqrt(in), 1/sqrt(in))
            bound = 1.0 / float(layer_size) ** 0.5
            w = jax.random.uniform(kw, (layer_size, out_size),
                                   minval=-bound, maxval=bound, dtype=jnp.float32)
            b = jax.random.uniform(kb, (out_size,),
                                   minval=-bound, maxval=bound, dtype=jnp.float32)
            self.logical.append((w, b))

            if idx == len(sizes) - 1:
                # Only the final layer is lane-padded (for an unmasked output
                # store); padded columns are 0 and get sliced away.
                n_pad = _round_up(out_size, _LANE)
                w_k = (jnp.zeros((layer_size, n_pad), jnp.float32)
                       .at[:, :out_size].set(w)
                       .astype(jnp.bfloat16))
                b_k = jnp.zeros((1, n_pad), jnp.float32).at[0, :out_size].set(b)
            else:
                w_k = w.astype(jnp.bfloat16)
                b_k = b.reshape(1, out_size)
            self.kernel_params.append((w_k, b_k))

            layer_size = out_size

    def __call__(self, x):
        # x.view(x.size(0), -1): metadata-only reshape, no pad, no cast here.
        B = x.shape[0]
        h = x.reshape(B, -1)
        assert h.shape[1] == self.input_size, h.shape

        out_pad = fused_mlp(h, self.kernel_params, self.num_hidden)
        return out_pad[:, :self.output_size]


def _reference_forward(disc, x):
    """Pure-jnp reference mirroring the kernel's bf16-operand / f32-accum math."""
    B = x.shape[0]
    h = x.reshape(B, -1).astype(jnp.bfloat16)
    n = len(disc.logical)
    for i, (w, b) in enumerate(disc.logical):
        y = jnp.dot(h, w.astype(jnp.bfloat16),
                    preferred_element_type=jnp.float32) + b
        if i < n - 1:
            y = jnp.where(y > 0, y, 0.2 * y)
            h = y.astype(jnp.bfloat16)
        else:
            y = jax.nn.sigmoid(y)
    return y


if __name__ == "__main__":
    key = jax.random.PRNGKey(0)
    key, k_x, k_p = jax.random.split(key, 3)

    # Small shapes consistent with the module's forward (NCHW image -> flatten).
    B, C, H, W = 2, 4, 16, 16
    input_size = C * H * W          # 1024
    hidden_layers = [32, 32]
    output_size = 1

    x = jax.random.normal(k_x, (B, C, H, W), dtype=jnp.float32)

    disc = DiscriminatorPallas(input_size, output_size, hidden_layers, k_p)

    out = jax.block_until_ready(disc(x))
    assert out.shape == (B, output_size), out.shape

    ref = _reference_forward(disc, x)
    # Exact sigmoid now; tolerance only covers bf16 MXU accumulation-order
    # differences vs. the XLA reference.
    assert jnp.allclose(out, ref, atol=1e-4, rtol=1e-4), (out, ref)

    print("KERNEL_OK")
</pallas_src>

<mosaic_0001>
module attributes {stable_mosaic.version = 11 : i64} {
  func.func @_fused_mlp_kernel(%arg0: memref<2x1024xf32, #tpu.memory_space<vmem>>, %arg1: memref<1024x32xbf16, #tpu.memory_space<vmem>>, %arg2: memref<1x32xf32, #tpu.memory_space<vmem>>, %arg3: memref<32x32xbf16, #tpu.memory_space<vmem>>, %arg4: memref<1x32xf32, #tpu.memory_space<vmem>>, %arg5: memref<32x128xbf16, #tpu.memory_space<vmem>>, %arg6: memref<1x128xf32, #tpu.memory_space<vmem>>, %arg7: memref<2x128xf32, #tpu.memory_space<vmem>>) attributes {dimension_semantics = [], scalar_prefetch = 0 : i64, scratch_operands = 0 : i64, tpu.core_type = #tpu.core_type<tc>} {
    %c0 = arith.constant 0 : index
    %c0_0 = arith.constant 0 : index
    %0 = vector.load %arg0[%c0, %c0_0] : memref<2x1024xf32, #tpu.memory_space<vmem>>, vector<2x1024xf32>
    %1 = arith.truncf %0 : vector<2x1024xf32> to vector<2x1024xbf16>
    %c0_1 = arith.constant 0 : index
    %c0_2 = arith.constant 0 : index
    %2 = vector.load %arg1[%c0_1, %c0_2] : memref<1024x32xbf16, #tpu.memory_space<vmem>>, vector<1024x32xbf16>
    %c0_3 = arith.constant 0 : index
    %c0_4 = arith.constant 0 : index
    %3 = vector.load %arg2[%c0_3, %c0_4] : memref<1x32xf32, #tpu.memory_space<vmem>>, vector<1x32xf32>
    %cst = arith.constant dense<0.000000e+00> : vector<2x32xf32>
    %4 = tpu.matmul %1, %2, %cst {dimension_numbers = #tpu.dot_dimension_numbers<[1], [0], [0], [1], [0, 0, 1, 1], [], []>} : vector<2x1024xbf16>, vector<1024x32xbf16>, vector<2x32xf32> -> vector<2x32xf32>
    %5 = vector.broadcast %3 : vector<1x32xf32> to vector<2x32xf32>
    %6 = arith.addf %4, %5 : vector<2x32xf32>
    %cst_5 = arith.constant 0.000000e+00 : f32
    %7 = vector.broadcast %cst_5 : f32 to vector<2x32xf32>
    %8 = arith.cmpf ogt, %6, %7 : vector<2x32xf32>
    %cst_6 = arith.constant 2.000000e-01 : f32
    %9 = vector.broadcast %cst_6 : f32 to vector<2x32xf32>
    %10 = arith.mulf %9, %6 : vector<2x32xf32>
    %11 = arith.select %8, %6, %10 : vector<2x32xi1>, vector<2x32xf32>
    %12 = arith.truncf %11 : vector<2x32xf32> to vector<2x32xbf16>
    %c0_7 = arith.constant 0 : index
    %c0_8 = arith.constant 0 : index
    %13 = vector.load %arg3[%c0_7, %c0_8] : memref<32x32xbf16, #tpu.memory_space<vmem>>, vector<32x32xbf16>
    %c0_9 = arith.constant 0 : index
    %c0_10 = arith.constant 0 : index
    %14 = vector.load %arg4[%c0_9, %c0_10] : memref<1x32xf32, #tpu.memory_space<vmem>>, vector<1x32xf32>
    %cst_11 = arith.constant dense<0.000000e+00> : vector<2x32xf32>
    %15 = tpu.matmul %12, %13, %cst_11 {dimension_numbers = #tpu.dot_dimension_numbers<[1], [0], [0], [1], [0, 0, 1, 1], [], []>} : vector<2x32xbf16>, vector<32x32xbf16>, vector<2x32xf32> -> vector<2x32xf32>
    %16 = vector.broadcast %14 : vector<1x32xf32> to vector<2x32xf32>
    %17 = arith.addf %15, %16 : vector<2x32xf32>
    %cst_12 = arith.constant 0.000000e+00 : f32
    %18 = vector.broadcast %cst_12 : f32 to vector<2x32xf32>
    %19 = arith.cmpf ogt, %17, %18 : vector<2x32xf32>
    %cst_13 = arith.constant 2.000000e-01 : f32
    %20 = vector.broadcast %cst_13 : f32 to vector<2x32xf32>
    %21 = arith.mulf %20, %17 : vector<2x32xf32>
    %22 = arith.select %19, %17, %21 : vector<2x32xi1>, vector<2x32xf32>
    %23 = arith.truncf %22 : vector<2x32xf32> to vector<2x32xbf16>
    %c0_14 = arith.constant 0 : index
    %c0_15 = arith.constant 0 : index
    %24 = vector.load %arg5[%c0_14, %c0_15] : memref<32x128xbf16, #tpu.memory_space<vmem>>, vector<32x128xbf16>
    %c0_16 = arith.constant 0 : index
    %c0_17 = arith.constant 0 : index
    %25 = vector.load %arg6[%c0_16, %c0_17] : memref<1x128xf32, #tpu.memory_space<vmem>>, vector<1x128xf32>
    %cst_18 = arith.constant dense<0.000000e+00> : vector<2x128xf32>
    %26 = tpu.matmul %23, %24, %cst_18 {dimension_numbers = #tpu.dot_dimension_numbers<[1], [0], [0], [1], [0, 0, 1, 1], [], []>} : vector<2x32xbf16>, vector<32x128xbf16>, vector<2x128xf32> -> vector<2x128xf32>
    %27 = vector.broadcast %25 : vector<1x128xf32> to vector<2x128xf32>
    %28 = arith.addf %26, %27 : vector<2x128xf32>
    %cst_19 = arith.constant 0.000000e+00 : f32
    %29 = vector.broadcast %cst_19 : f32 to vector<2x128xf32>
    %30 = arith.subf %29, %28 : vector<2x128xf32>
    %31 = math.exp %30 : vector<2x128xf32>
    %cst_20 = arith.constant 1.000000e+00 : f32
    %32 = vector.broadcast %cst_20 : f32 to vector<2x128xf32>
    %33 = arith.addf %32, %31 : vector<2x128xf32>
    %cst_21 = arith.constant 1.000000e+00 : f32
    %34 = vector.broadcast %cst_21 : f32 to vector<2x128xf32>
    %35 = arith.divf %34, %33 : vector<2x128xf32>
    %c0_22 = arith.constant 0 : index
    %c0_23 = arith.constant 0 : index
    %36 = vector.load %arg7[%c0_22, %c0_23] : memref<2x128xf32, #tpu.memory_space<vmem>>, vector<2x128xf32>
    tpu.vector_store %arg7[%c0_22, %c0_23], %35 {strides = array<i32>} : memref<2x128xf32, #tpu.memory_space<vmem>>, vector<2x128xf32>,
    return
  }
}

</mosaic_0001>

<llo_original>
// kernel: tpu_custom_call.1
$region0: #{tpu_custom_call.1}
  #allocation0 [shape = 'u32[]', space=smem, size = 0x4, offset = 0x4, fixed_abs, tag = 'smem constant byte address 0x4 - core index']
  #allocation1 [shape = 'u32[72,128]{1,0:T(1,128)}', space=vmem, size = 0x9000, scoped, tag = 'internal scratch']
  %s0 = inlined_call_operand.vmem [shape: f32[2,1024], index: 0, kind: input, shape index: {}]
  %s1 = inlined_call_operand.vmem [shape: bf16[1024,32], index: 1, kind: input, shape index: {}]
  %s2 = inlined_call_operand.vmem [shape: f32[1,32], index: 2, kind: input, shape index: {}]
  %s3 = inlined_call_operand.vmem [shape: bf16[32,32], index: 3, kind: input, shape index: {}]
  %s4 = inlined_call_operand.vmem [shape: f32[1,32], index: 4, kind: input, shape index: {}]
  %s5 = inlined_call_operand.vmem [shape: bf16[32,128], index: 5, kind: input, shape index: {}]
  %s6 = inlined_call_operand.vmem [shape: f32[1,128], index: 6, kind: input, shape index: {}]
  %s7 = inlined_call_operand.hbm [shape: f32[2,128], index: 7, kind: output, shape index: {}]
  %s8 = sld [smem:[#allocation0]]
  $region38: #{tpu_custom_call.1} parent=0
    _
  %s10 = ssub.s32 1, %s8
  %s11 = scalar_select 0, %s10, %s8
  $region1: #{tpu_custom_call.1} parent=0
    #allocation2 [shape = 'u8[1024]{0}', space=vmem, size = 0x400, scoped, tag = 'output window, operand 0, single buffered']
    #allocation3 [shape = 's32[1]{0}', space=sflag, size = 0x4, scoped, tag = 'scoped memory for tpu_custom_call.1']
    %12 = vsyncpa [#allocation3], 0
    // Predicated region
    $region2: #{tpu_custom_call.1} parent=1 // pred_check
      _
    $region3: #{tpu_custom_call.1} parent=1 // pred_check_branch
      %14 = sbr.rel (0) target = $region5
    $region4: #{tpu_custom_call.1} parent=1 // pred_region
      _
    $region5: #{tpu_custom_call.1} parent=1 // pred_fallthru
      _
    // Predicated region
    $region6: #{tpu_custom_call.1} parent=1 // pred_check
      _
    $region7: #{tpu_custom_call.1} parent=1 // pred_check_branch
      %16 = sbr.rel (0) target = $region9
    $region8: #{tpu_custom_call.1} parent=1 // pred_region
      _
    $region9: #{tpu_custom_call.1} parent=1 // pred_fallthru
      _
    // Predicated region
    $region10: #{tpu_custom_call.1} parent=1 // pred_check
      _
    $region11: #{tpu_custom_call.1} parent=1 // pred_check_branch
      %18 = sbr.rel (0) target = $region13
    $region12: #{tpu_custom_call.1} parent=1 // pred_region
      _
    $region13: #{tpu_custom_call.1} parent=1 // pred_fallthru
      _
    // Predicated region
    $region14: #{tpu_custom_call.1} parent=1 // pred_check
      _
    $region15: #{tpu_custom_call.1} parent=1 // pred_check_branch
      %20 = sbr.rel (0) target = $region17
    $region16: #{tpu_custom_call.1} parent=1 // pred_region
      _
    $region17: #{tpu_custom_call.1} parent=1 // pred_fallthru
      _
    // Predicated region
    $region18: #{tpu_custom_call.1} parent=1 // pred_check
      _
    $region19: #{tpu_custom_call.1} parent=1 // pred_check_branch
      %22 = sbr.rel (0) target = $region21
    $region20: #{tpu_custom_call.1} parent=1 // pred_region
      _
    $region21: #{tpu_custom_call.1} parent=1 // pred_fallthru
      _
    // Predicated region
    $region22: #{tpu_custom_call.1} parent=1 // pred_check
      _
    $region23: #{tpu_custom_call.1} parent=1 // pred_check_branch
      %24 = sbr.rel (0) target = $region25
    $region24: #{tpu_custom_call.1} parent=1 // pred_region
      _
    $region25: #{tpu_custom_call.1} parent=1 // pred_fallthru
      _
    // Predicated region
    $region26: #{tpu_custom_call.1} parent=1 // pred_check
      _
    $region27: #{tpu_custom_call.1} parent=1 // pred_check_branch
      %26 = sbr.rel (0) target = $region29
    $region28: #{tpu_custom_call.1} parent=1 // pred_region
      _
    $region29: #{tpu_custom_call.1} parent=1 // pred_fallthru
      _
    %v28 = vld [vmem:[%s0] sm:$0xff]
    %v29 = vld [vmem:[%s0 + $0x8] sm:$0xff]
    %32 = vst [vmem:[#allocation1] ss:$4 sm:$0xff] %v28
    %s33 = scalar_lea.vmem [#allocation1], 32
    %34 = vst [vmem:[%s33] ss:$4 sm:$0xff] %v29
    %v35 = vld.sshfl [vmem:[#allocation1] sm:$0xff pattern:$0x73625140]
    %v36 = vld.sshfl [vmem:[#allocation1 + $0x8] sm:$0xff pattern:$0x73625140]
    %v37 = vld.sshfl [vmem:[#allocation1 + $0x10] sm:$0xff pattern:$0x73625140]
    %v38 = vld.sshfl [vmem:[#allocation1 + $0x18] sm:$0xff pattern:$0x73625140]
    %v39 = vld.sshfl [vmem:[#allocation1 + $0x20] sm:$0xff pattern:$0x73625140]
    %v40 = vld.sshfl [vmem:[#allocation1 + $0x28] sm:$0xff pattern:$0x73625140]
    %v41 = vld.sshfl [vmem:[#allocation1 + $0x30] sm:$0xff pattern:$0x73625140]
    %v42 = vld.sshfl [vmem:[#allocation1 + $0x38] sm:$0xff pattern:$0x73625140]
    %v51 = vpack.c.bf16 %v35, %v35
    %v52 = vpack.c.bf16 %v36, %v36
    %v53 = vpack.c.bf16 %v37, %v37
    %v54 = vpack.c.bf16 %v38, %v38
    %v55 = vpack.c.bf16 %v39, %v39
    %v56 = vpack.c.bf16 %v40, %v40
    %v57 = vpack.c.bf16 %v41, %v41
    %v58 = vpack.c.bf16 %v42, %v42
    %v59 = vld [vmem:[%s1] sm:$0xf]
    %v60 = vld [vmem:[%s1 + $0x4] sm:$0xf]
    %v61 = vld [vmem:[%s1 + $0x8] sm:$0xf]
    %v62 = vld [vmem:[%s1 + $0xc] sm:$0xf]
    %v63 = vld [vmem:[%s1 + $0x10] sm:$0xf]
    %v64 = vld [vmem:[%s1 + $0x14] sm:$0xf]
    %v65 = vld [vmem:[%s1 + $0x18] sm:$0xf]
    %v66 = vld [vmem:[%s1 + $0x1c] sm:$0xf]
    %v67 = vld [vmem:[%s1 + $0x20] sm:$0xf]
    %v68 = vld [vmem:[%s1 + $0x24] sm:$0xf]
    %v69 = vld [vmem:[%s1 + $0x28] sm:$0xf]
    %v70 = vld [vmem:[%s1 + $0x2c] sm:$0xf]
    %v71 = vld [vmem:[%s1 + $0x30] sm:$0xf]
    %v72 = vld [vmem:[%s1 + $0x34] sm:$0xf]
    %v73 = vld [vmem:[%s1 + $0x38] sm:$0xf]
    %v74 = vld [vmem:[%s1 + $0x3c] sm:$0xf]
    %v75 = vld [vmem:[%s1 + $0x40] sm:$0xf]
    %v76 = vld [vmem:[%s1 + $0x44] sm:$0xf]
    %v77 = vld [vmem:[%s1 + $0x48] sm:$0xf]
    %v78 = vld [vmem:[%s1 + $0x4c] sm:$0xf]
    %v79 = vld [vmem:[%s1 + $0x50] sm:$0xf]
    %v80 = vld [vmem:[%s1 + $0x54] sm:$0xf]
    %v81 = vld [vmem:[%s1 + $0x58] sm:$0xf]
    %v82 = vld [vmem:[%s1 + $0x5c] sm:$0xf]
    %v83 = vld [vmem:[%s1 + $0x60] sm:$0xf]
    %v84 = vld [vmem:[%s1 + $0x64] sm:$0xf]
    %v85 = vld [vmem:[%s1 + $0x68] sm:$0xf]
    %v86 = vld [vmem:[%s1 + $0x6c] sm:$0xf]
    %v87 = vld [vmem:[%s1 + $0x70] sm:$0xf]
    %v88 = vld [vmem:[%s1 + $0x74] sm:$0xf]
    %v89 = vld [vmem:[%s1 + $0x78] sm:$0xf]
    %v90 = vld [vmem:[%s1 + $0x7c] sm:$0xf]
    %v91 = vld [vmem:[%s1 + $0x80] sm:$0xf]
    %v92 = vld [vmem:[%s1 + $0x84] sm:$0xf]
    %v93 = vld [vmem:[%s1 + $0x88] sm:$0xf]
    %v94 = vld [vmem:[%s1 + $0x8c] sm:$0xf]
    %v95 = vld [vmem:[%s1 + $0x90] sm:$0xf]
    %v96 = vld [vmem:[%s1 + $0x94] sm:$0xf]
    %v97 = vld [vmem:[%s1 + $0x98] sm:$0xf]
    %v98 = vld [vmem:[%s1 + $0x9c] sm:$0xf]
    %v99 = vld [vmem:[%s1 + $0xa0] sm:$0xf]
    %v100 = vld [vmem:[%s1 + $0xa4] sm:$0xf]
    %v101 = vld [vmem:[%s1 + $0xa8] sm:$0xf]
    %v102 = vld [vmem:[%s1 + $0xac] sm:$0xf]
    %v103 = vld [vmem:[%s1 + $0xb0] sm:$0xf]
    %v104 = vld [vmem:[%s1 + $0xb4] sm:$0xf]
    %v105 = vld [vmem:[%s1 + $0xb8] sm:$0xf]
    %v106 = vld [vmem:[%s1 + $0xbc] sm:$0xf]
    %v107 = vld [vmem:[%s1 + $0xc0] sm:$0xf]
    %v108 = vld [vmem:[%s1 + $0xc4] sm:$0xf]
    %v109 = vld [vmem:[%s1 + $0xc8] sm:$0xf]
    %v110 = vld [vmem:[%s1 + $0xcc] sm:$0xf]
    %v111 = vld [vmem:[%s1 + $0xd0] sm:$0xf]
    %v112 = vld [vmem:[%s1 + $0xd4] sm:$0xf]
    %v113 = vld [vmem:[%s1 + $0xd8] sm:$0xf]
    %v114 = vld [vmem:[%s1 + $0xdc] sm:$0xf]
    %v115 = vld [vmem:[%s1 + $0xe0] sm:$0xf]
    %v116 = vld [vmem:[%s1 + $0xe4] sm:$0xf]
    %v117 = vld [vmem:[%s1 + $0xe8] sm:$0xf]
    %v118 = vld [vmem:[%s1 + $0xec] sm:$0xf]
    %v119 = vld [vmem:[%s1 + $0xf0] sm:$0xf]
    %v120 = vld [vmem:[%s1 + $0xf4] sm:$0xf]
    %v121 = vld [vmem:[%s1 + $0xf8] sm:$0xf]
    %v122 = vld [vmem:[%s1 + $0xfc] sm:$0xf]
    %v123 = vld [vmem:[%s1 + $0x100] sm:$0xf]
    %v124 = vld [vmem:[%s1 + $0x104] sm:$0xf]
    %v125 = vld [vmem:[%s1 + $0x108] sm:$0xf]
    %v126 = vld [vmem:[%s1 + $0x10c] sm:$0xf]
    %v127 = vld [vmem:[%s1 + $0x110] sm:$0xf]
    %v128 = vld [vmem:[%s1 + $0x114] sm:$0xf]
    %v129 = vld [vmem:[%s1 + $0x118] sm:$0xf]
    %v130 = vld [vmem:[%s1 + $0x11c] sm:$0xf]
    %v131 = vld [vmem:[%s1 + $0x120] sm:$0xf]
    %v132 = vld [vmem:[%s1 + $0x124] sm:$0xf]
    %v133 = vld [vmem:[%s1 + $0x128] sm:$0xf]
    %v134 = vld [vmem:[%s1 + $0x12c] sm:$0xf]
    %v135 = vld [vmem:[%s1 + $0x130] sm:$0xf]
    %v136 = vld [vmem:[%s1 + $0x134] sm:$0xf]
    %v137 = vld [vmem:[%s1 + $0x138] sm:$0xf]
    %v138 = vld [vmem:[%s1 + $0x13c] sm:$0xf]
    %v139 = vld [vmem:[%s1 + $0x140] sm:$0xf]
    %v140 = vld [vmem:[%s1 + $0x144] sm:$0xf]
    %v141 = vld [vmem:[%s1 + $0x148] sm:$0xf]
    %v142 = vld [vmem:[%s1 + $0x14c] sm:$0xf]
    %v143 = vld [vmem:[%s1 + $0x150] sm:$0xf]
    %v144 = vld [vmem:[%s1 + $0x154] sm:$0xf]
    %v145 = vld [vmem:[%s1 + $0x158] sm:$0xf]
    %v146 = vld [vmem:[%s1 + $0x15c] sm:$0xf]
    %v147 = vld [vmem:[%s1 + $0x160] sm:$0xf]
    %v148 = vld [vmem:[%s1 + $0x164] sm:$0xf]
    %v149 = vld [vmem:[%s1 + $0x168] sm:$0xf]
    %v150 = vld [vmem:[%s1 + $0x16c] sm:$0xf]
    %v151 = vld [vmem:[%s1 + $0x170] sm:$0xf]
    %v152 = vld [vmem:[%s1 + $0x174] sm:$0xf]
    %v153 = vld [vmem:[%s1 + $0x178] sm:$0xf]
    %v154 = vld [vmem:[%s1 + $0x17c] sm:$0xf]
    %v155 = vld [vmem:[%s1 + $0x180] sm:$0xf]
    %v156 = vld [vmem:[%s1 + $0x184] sm:$0xf]
    %v157 = vld [vmem:[%s1 + $0x188] sm:$0xf]
    %v158 = vld [vmem:[%s1 + $0x18c] sm:$0xf]
    %v159 = vld [vmem:[%s1 + $0x190] sm:$0xf]
    %v160 = vld [vmem:[%s1 + $0x194] sm:$0xf]
    %v161 = vld [vmem:[%s1 + $0x198] sm:$0xf]
    %v162 = vld [vmem:[%s1 + $0x19c] sm:$0xf]
    %v163 = vld [vmem:[%s1 + $0x1a0] sm:$0xf]
    %v164 = vld [vmem:[%s1 + $0x1a4] sm:$0xf]
    %v165 = vld [vmem:[%s1 + $0x1a8] sm:$0xf]
    %v166 = vld [vmem:[%s1 + $0x1ac] sm:$0xf]
    %v167 = vld [vmem:[%s1 + $0x1b0] sm:$0xf]
    %v168 = vld [vmem:[%s1 + $0x1b4] sm:$0xf]
    %v169 = vld [vmem:[%s1 + $0x1b8] sm:$0xf]
    %v170 = vld [vmem:[%s1 + $0x1bc] sm:$0xf]
    %v171 = vld [vmem:[%s1 + $0x1c0] sm:$0xf]
    %v172 = vld [vmem:[%s1 + $0x1c4] sm:$0xf]
    %v173 = vld [vmem:[%s1 + $0x1c8] sm:$0xf]
    %v174 = vld [vmem:[%s1 + $0x1cc] sm:$0xf]
    %v175 = vld [vmem:[%s1 + $0x1d0] sm:$0xf]
    %v176 = vld [vmem:[%s1 + $0x1d4] sm:$0xf]
    %v177 = vld [vmem:[%s1 + $0x1d8] sm:$0xf]
    %v178 = vld [vmem:[%s1 + $0x1dc] sm:$0xf]
    %v179 = vld [vmem:[%s1 + $0x1e0] sm:$0xf]
    %v180 = vld [vmem:[%s1 + $0x1e4] sm:$0xf]
    %v181 = vld [vmem:[%s1 + $0x1e8] sm:$0xf]
    %v182 = vld [vmem:[%s1 + $0x1ec] sm:$0xf]
    %v183 = vld [vmem:[%s1 + $0x1f0] sm:$0xf]
    %v184 = vld [vmem:[%s1 + $0x1f4] sm:$0xf]
    %v185 = vld [vmem:[%s1 + $0x1f8] sm:$0xf]
    %v186 = vld [vmem:[%s1 + $0x1fc] sm:$0xf]
    %v187 = vld [vmem:[%s2] sm:$0x1]
    %v189 = vperm.slane %v187, 0
    %v319 = vunpack.c.l.b16 %v59
    %v320 = vunpack.c.l.b16 %v60
    %v321 = vunpack.c.l.b16 %v61
    %v322 = vunpack.c.l.b16 %v62
    %v323 = vunpack.c.l.b16 %v63
    %v324 = vunpack.c.l.b16 %v64
    %v325 = vunpack.c.l.b16 %v65
    %v326 = vunpack.c.l.b16 %v66
    %v327 = vunpack.c.l.b16 %v67
    %v328 = vunpack.c.l.b16 %v68
    %v329 = vunpack.c.l.b16 %v69
    %v330 = vunpack.c.l.b16 %v70
    %v331 = vunpack.c.l.b16 %v71
    %v332 = vunpack.c.l.b16 %v72
    %v333 = vunpack.c.l.b16 %v73
    %v334 = vunpack.c.l.b16 %v74
    %v335 = vunpack.c.l.b16 %v75
    %v336 = vunpack.c.l.b16 %v76
    %v337 = vunpack.c.l.b16 %v77
    %v338 = vunpack.c.l.b16 %v78
    %v339 = vunpack.c.l.b16 %v79
    %v340 = vunpack.c.l.b16 %v80
    %v341 = vunpack.c.l.b16 %v81
    %v342 = vunpack.c.l.b16 %v82
    %v343 = vunpack.c.l.b16 %v83
    %v344 = vunpack.c.l.b16 %v84
    %v345 = vunpack.c.l.b16 %v85
    %v346 = vunpack.c.l.b16 %v86
    %v347 = vunpack.c.l.b16 %v87
    %v348 = vunpack.c.l.b16 %v88
    %v349 = vunpack.c.l.b16 %v89
    %v350 = vunpack.c.l.b16 %v90
    %v351 = vunpack.c.l.b16 %v91
    %v352 = vunpack.c.l.b16 %v92
    %v353 = vunpack.c.l.b16 %v93
    %v354 = vunpack.c.l.b16 %v94
    %v355 = vunpack.c.l.b16 %v95
    %v356 = vunpack.c.l.b16 %v96
    %v357 = vunpack.c.l.b16 %v97
    %v358 = vunpack.c.l.b16 %v98
    %v359 = vunpack.c.l.b16 %v99
    %v360 = vunpack.c.l.b16 %v100
    %v361 = vunpack.c.l.b16 %v101
    %v362 = vunpack.c.l.b16 %v102
    %v363 = vunpack.c.l.b16 %v103
    %v364 = vunpack.c.l.b16 %v104
    %v365 = vunpack.c.l.b16 %v105
    %v366 = vunpack.c.l.b16 %v106
    %v367 = vunpack.c.l.b16 %v107
    %v368 = vunpack.c.l.b16 %v108
    %v369 = vunpack.c.l.b16 %v109
    %v370 = vunpack.c.l.b16 %v110
    %v371 = vunpack.c.l.b16 %v111
    %v372 = vunpack.c.l.b16 %v112
    %v373 = vunpack.c.l.b16 %v113
    %v374 = vunpack.c.l.b16 %v114
    %v375 = vunpack.c.l.b16 %v115
    %v376 = vunpack.c.l.b16 %v116
    %v377 = vunpack.c.l.b16 %v117
    %v378 = vunpack.c.l.b16 %v118
    %v379 = vunpack.c.l.b16 %v119
    %v380 = vunpack.c.l.b16 %v120
    %v381 = vunpack.c.l.b16 %v121
    %v382 = vunpack.c.l.b16 %v122
    %v383 = vunpack.c.l.b16 %v123
    %v384 = vunpack.c.l.b16 %v124
    %v385 = vunpack.c.l.b16 %v125
    %v386 = vunpack.c.l.b16 %v126
    %v387 = vunpack.c.l.b16 %v127
    %v388 = vunpack.c.l.b16 %v128
    %v389 = vunpack.c.l.b16 %v129
    %v390 = vunpack.c.l.b16 %v130
    %v391 = vunpack.c.l.b16 %v131
    %v392 = vunpack.c.l.b16 %v132
    %v393 = vunpack.c.l.b16 %v133
    %v394 = vunpack.c.l.b16 %v134
    %v395 = vunpack.c.l.b16 %v135
    %v396 = vunpack.c.l.b16 %v136
    %v397 = vunpack.c.l.b16 %v137
    %v398 = vunpack.c.l.b16 %v138
    %v399 = vunpack.c.l.b16 %v139
    %v400 = vunpack.c.l.b16 %v140
    %v401 = vunpack.c.l.b16 %v141
    %v402 = vunpack.c.l.b16 %v142
    %v403 = vunpack.c.l.b16 %v143
    %v404 = vunpack.c.l.b16 %v144
    %v405 = vunpack.c.l.b16 %v145
    %v406 = vunpack.c.l.b16 %v146
    %v407 = vunpack.c.l.b16 %v147
    %v408 = vunpack.c.l.b16 %v148
    %v409 = vunpack.c.l.b16 %v149
    %v410 = vunpack.c.l.b16 %v150
    %v411 = vunpack.c.l.b16 %v151
    %v412 = vunpack.c.l.b16 %v152
    %v413 = vunpack.c.l.b16 %v153
    %v414 = vunpack.c.l.b16 %v154
    %v415 = vunpack.c.l.b16 %v155
    %v416 = vunpack.c.l.b16 %v156
    %v417 = vunpack.c.l.b16 %v157
    %v418 = vunpack.c.l.b16 %v158
    %v419 = vunpack.c.l.b16 %v159
    %v420 = vunpack.c.l.b16 %v160
    %v421 = vunpack.c.l.b16 %v161
    %v422 = vunpack.c.l.b16 %v162
    %v423 = vunpack.c.l.b16 %v163
    %v424 = vunpack.c.l.b16 %v164
    %v425 = vunpack.c.l.b16 %v165
    %v426 = vunpack.c.l.b16 %v166
    %v427 = vunpack.c.l.b16 %v167
    %v428 = vunpack.c.l.b16 %v168
    %v429 = vunpack.c.l.b16 %v169
    %v430 = vunpack.c.l.b16 %v170
    %v431 = vunpack.c.l.b16 %v171
    %v432 = vunpack.c.l.b16 %v172
    %v433 = vunpack.c.l.b16 %v173
    %v434 = vunpack.c.l.b16 %v174
    %v435 = vunpack.c.l.b16 %v175
    %v436 = vunpack.c.l.b16 %v176
    %v437 = vunpack.c.l.b16 %v177
    %v438 = vunpack.c.l.b16 %v178
    %v439 = vunpack.c.l.b16 %v179
    %v440 = vunpack.c.l.b16 %v180
    %v441 = vunpack.c.l.b16 %v181
    %v442 = vunpack.c.l.b16 %v182
    %v443 = vunpack.c.l.b16 %v183
    %v444 = vunpack.c.l.b16 %v184
    %v445 = vunpack.c.l.b16 %v185
    %v446 = vunpack.c.l.b16 %v186
    %v447 = vpack.c.b16 %v320, %v319
    %v448 = vpack.c.b16 %v322, %v321
    %v449 = vpack.c.b16 %v324, %v323
    %v450 = vpack.c.b16 %v326, %v325
    %v451 = vpack.c.b16 %v328, %v327
    %v452 = vpack.c.b16 %v330, %v329
    %v453 = vpack.c.b16 %v332, %v331
    %v454 = vpack.c.b16 %v334, %v333
    %v455 = vpack.c.b16 %v336, %v335
    %v456 = vpack.c.b16 %v338, %v337
    %v457 = vpack.c.b16 %v340, %v339
    %v458 = vpack.c.b16 %v342, %v341
    %v459 = vpack.c.b16 %v344, %v343
    %v460 = vpack.c.b16 %v346, %v345
    %v461 = vpack.c.b16 %v348, %v347
    %v462 = vpack.c.b16 %v350, %v349
    %v463 = vpack.c.b16 %v352, %v351
    %v464 = vpack.c.b16 %v354, %v353
    %v465 = vpack.c.b16 %v356, %v355
    %v466 = vpack.c.b16 %v358, %v357
    %v467 = vpack.c.b16 %v360, %v359
    %v468 = vpack.c.b16 %v362, %v361
    %v469 = vpack.c.b16 %v364, %v363
    %v470 = vpack.c.b16 %v366, %v365
    %v471 = vpack.c.b16 %v368, %v367
    %v472 = vpack.c.b16 %v370, %v369
    %v473 = vpack.c.b16 %v372, %v371
    %v474 = vpack.c.b16 %v374, %v373
    %v475 = vpack.c.b16 %v376, %v375
    %v476 = vpack.c.b16 %v378, %v377
    %v477 = vpack.c.b16 %v380, %v379
    %v478 = vpack.c.b16 %v382, %v381
    %v479 = vpack.c.b16 %v384, %v383
    %v480 = vpack.c.b16 %v386, %v385
    %v481 = vpack.c.b16 %v388, %v387
    %v482 = vpack.c.b16 %v390, %v389
    %v483 = vpack.c.b16 %v392, %v391
    %v484 = vpack.c.b16 %v394, %v393
    %v485 = vpack.c.b16 %v396, %v395
    %v486 = vpack.c.b16 %v398, %v397
    %v487 = vpack.c.b16 %v400, %v399
    %v488 = vpack.c.b16 %v402, %v401
    %v489 = vpack.c.b16 %v404, %v403
    %v490 = vpack.c.b16 %v406, %v405
    %v491 = vpack.c.b16 %v408, %v407
    %v492 = vpack.c.b16 %v410, %v409
    %v493 = vpack.c.b16 %v412, %v411
    %v494 = vpack.c.b16 %v414, %v413
    %v495 = vpack.c.b16 %v416, %v415
    %v496 = vpack.c.b16 %v418, %v417
    %v497 = vpack.c.b16 %v420, %v419
    %v498 = vpack.c.b16 %v422, %v421
    %v499 = vpack.c.b16 %v424, %v423
    %v500 = vpack.c.b16 %v426, %v425
    %v501 = vpack.c.b16 %v428, %v427
    %v502 = vpack.c.b16 %v430, %v429
    %v503 = vpack.c.b16 %v432, %v431
    %v504 = vpack.c.b16 %v434, %v433
    %v505 = vpack.c.b16 %v436, %v435
    %v506 = vpack.c.b16 %v438, %v437
    %v507 = vpack.c.b16 %v440, %v439
    %v508 = vpack.c.b16 %v442, %v441
    %v509 = vpack.c.b16 %v444, %v443
    %v510 = vpack.c.b16 %v446, %v445
    %575 = vmatpush.bf16.msra.mxu0 %v454
    %576 = vmatpush.bf16.msra.mxu0 %v453
    %577 = vmatpush.bf16.msra.mxu0 %v452
    %578 = vmatpush.bf16.msra.mxu0 %v451
    %579 = vmatpush.bf16.msra.mxu0 %v450
    %580 = vmatpush.bf16.msra.mxu0 %v449
    %581 = vmatpush.bf16.msra.mxu0 %v448
    %582 = vmatpush.bf16.msra.mxu0 %v447
    %583 = vmatmul.bf16.gmra.mxu0 %v51
    %v584 = vpop.f32.mrf.mxu0
    %v585 = vadd.f32 %v189, %v584
    %v586 = vpop.f32.mrf.mxu0
    %587 = vdwg.mxu0
    %588 = vmatpush.bf16.msra.mxu0 %v462
    %589 = vmatpush.bf16.msra.mxu0 %v461
    %590 = vmatpush.bf16.msra.mxu0 %v460
    %591 = vmatpush.bf16.msra.mxu0 %v459
    %592 = vmatpush.bf16.msra.mxu0 %v458
    %593 = vmatpush.bf16.msra.mxu0 %v457
    %594 = vmatpush.bf16.msra.mxu0 %v456
    %595 = vmatpush.bf16.msra.mxu0 %v455
    %596 = vmatmul.bf16.gmra.mxu0 %v52
    %v597 = vpop.f32.mrf.mxu0
    %v598 = vadd.f32 %v585, %v597
    %v599 = vpop.f32.mrf.mxu0
    %600 = vdwg.mxu0
    %601 = vmatpush.bf16.msra.mxu0 %v470
    %602 = vmatpush.bf16.msra.mxu0 %v469
    %603 = vmatpush.bf16.msra.mxu0 %v468
    %604 = vmatpush.bf16.msra.mxu0 %v467
    %605 = vmatpush.bf16.msra.mxu0 %v466
    %606 = vmatpush.bf16.msra.mxu0 %v465
    %607 = vmatpush.bf16.msra.mxu0 %v464
    %608 = vmatpush.bf16.msra.mxu0 %v463
    %609 = vmatmul.bf16.gmra.mxu0 %v53
    %v610 = vpop.f32.mrf.mxu0
    %v611 = vadd.f32 %v598, %v610
    %v612 = vpop.f32.mrf.mxu0
    %613 = vdwg.mxu0
    %614 = vmatpush.bf16.msra.mxu0 %v478
    %615 = vmatpush.bf16.msra.mxu0 %v477
    %616 = vmatpush.bf16.msra.mxu0 %v476
    %617 = vmatpush.bf16.msra.mxu0 %v475
    %618 = vmatpush.bf16.msra.mxu0 %v474
    %619 = vmatpush.bf16.msra.mxu0 %v473
    %620 = vmatpush.bf16.msra.mxu0 %v472
    %621 = vmatpush.bf16.msra.mxu0 %v471
    %622 = vmatmul.bf16.gmra.mxu0 %v54
    %v623 = vpop.f32.mrf.mxu0
    %v624 = vadd.f32 %v611, %v623
    %v625 = vpop.f32.mrf.mxu0
    %626 = vdwg.mxu0
    %627 = vmatpush.bf16.msra.mxu0 %v486
    %628 = vmatpush.bf16.msra.mxu0 %v485
    %629 = vmatpush.bf16.msra.mxu0 %v484
    %630 = vmatpush.bf16.msra.mxu0 %v483
    %631 = vmatpush.bf16.msra.mxu0 %v482
    %632 = vmatpush.bf16.msra.mxu0 %v481
    %633 = vmatpush.bf16.msra.mxu0 %v480
    %634 = vmatpush.bf16.msra.mxu0 %v479
    %635 = vmatmul.bf16.gmra.mxu0 %v55
    %v636 = vpop.f32.mrf.mxu0
    %v637 = vadd.f32 %v624, %v636
    %v638 = vpop.f32.mrf.mxu0
    %639 = vdwg.mxu0
    %640 = vmatpush.bf16.msra.mxu0 %v494
    %641 = vmatpush.bf16.msra.mxu0 %v493
    %642 = vmatpush.bf16.msra.mxu0 %v492
    %643 = vmatpush.bf16.msra.mxu0 %v491
    %644 = vmatpush.bf16.msra.mxu0 %v490
    %645 = vmatpush.bf16.msra.mxu0 %v489
    %646 = vmatpush.bf16.msra.mxu0 %v488
    %647 = vmatpush.bf16.msra.mxu0 %v487
    %648 = vmatmul.bf16.gmra.mxu0 %v56
    %v649 = vpop.f32.mrf.mxu0
    %v650 = vadd.f32 %v637, %v649
    %v651 = vpop.f32.mrf.mxu0
    %652 = vdwg.mxu0
    %653 = vmatpush.bf16.msra.mxu0 %v502
    %654 = vmatpush.bf16.msra.mxu0 %v501
    %655 = vmatpush.bf16.msra.mxu0 %v500
    %656 = vmatpush.bf16.msra.mxu0 %v499
    %657 = vmatpush.bf16.msra.mxu0 %v498
    %658 = vmatpush.bf16.msra.mxu0 %v497
    %659 = vmatpush.bf16.msra.mxu0 %v496
    %660 = vmatpush.bf16.msra.mxu0 %v495
    %661 = vmatmul.bf16.gmra.mxu0 %v57
    %v662 = vpop.f32.mrf.mxu0
    %v663 = vadd.f32 %v650, %v662
    %v664 = vpop.f32.mrf.mxu0
    %665 = vdwg.mxu0
    %666 = vmatpush.bf16.msra.mxu0 %v510
    %667 = vmatpush.bf16.msra.mxu0 %v509
    %668 = vmatpush.bf16.msra.mxu0 %v508
    %669 = vmatpush.bf16.msra.mxu0 %v507
    %670 = vmatpush.bf16.msra.mxu0 %v506
    %671 = vmatpush.bf16.msra.mxu0 %v505
    %672 = vmatpush.bf16.msra.mxu0 %v504
    %673 = vmatpush.bf16.msra.mxu0 %v503
    %674 = vmatmul.bf16.gmra.mxu0 %v58
    %v675 = vpop.f32.mrf.mxu0
    %v676 = vadd.f32 %v663, %v675
    %v677 = vpop.f32.mrf.mxu0
    %678 = vdwg.mxu0
    %vm679 = vcmp.gt.f32.partialorder %v676, 0.0
    %v680 = vmul.f32 %v676, 0.2
    %v681 = vsel %vm679, %v676, %v680
    %v682 = vpack.c.bf16 %v681, %v681
    %v683 = vld [vmem:[%s3] sm:$0xf]
    %v684 = vld [vmem:[%s3 + $0x4] sm:$0xf]
    %v685 = vld [vmem:[%s3 + $0x8] sm:$0xf]
    %v686 = vld [vmem:[%s3 + $0xc] sm:$0xf]
    %v687 = vld [vmem:[%s4] sm:$0x1]
    %v689 = vperm.slane %v687, 0
    %v695 = vunpack.c.l.b16 %v683
    %v696 = vunpack.c.l.b16 %v684
    %v697 = vunpack.c.l.b16 %v685
    %v698 = vunpack.c.l.b16 %v686
    %v699 = vpack.c.b16 %v696, %v695
    %v700 = vpack.c.b16 %v698, %v697
    %vm703 = vcmask 261120
    %v705 = vsel %vm703, %v682, 0
    %707 = vmatpush.bf16.msra.mxu0 0
    %708 = vmatpush.bf16.msra.mxu0 0
    %709 = vmatpush.bf16.msra.mxu0 0
    %710 = vmatpush.bf16.msra.mxu0 0
    %711 = vmatpush.bf16.msra.mxu0 0
    %712 = vmatpush.bf16.msra.mxu0 0
    %713 = vmatpush.bf16.msra.mxu0 %v700
    %714 = vmatpush.bf16.msra.mxu0 %v699
    %715 = vmatmul.bf16.gmra.mxu0 %v705
    %v716 = vpop.f32.mrf.mxu0
    %v717 = vadd.f32 %v689, %v716
    %v718 = vpop.f32.mrf.mxu0
    %719 = vdwg.mxu0
    %vm720 = vcmp.gt.f32.partialorder %v717, 0.0
    %v721 = vmul.f32 %v717, 0.2
    %v722 = vsel %vm720, %v717, %v721
    %v723 = vpack.c.bf16 %v722, %v722
    %v724 = vld [vmem:[%s5] sm:$0xf]
    %v725 = vld [vmem:[%s5 + $0x4] sm:$0xf]
    %v726 = vld [vmem:[%s5 + $0x8] sm:$0xf]
    %v727 = vld [vmem:[%s5 + $0xc] sm:$0xf]
    %v728 = vld [vmem:[%s6] sm:$0x1]
    %v730 = vperm.slane %v728, 0
    %v736 = vunpack.c.l.b16 %v724
    %v737 = vunpack.c.l.b16 %v725
    %v738 = vunpack.c.l.b16 %v726
    %v739 = vunpack.c.l.b16 %v727
    %v740 = vpack.c.b16 %v737, %v736
    %v741 = vpack.c.b16 %v739, %v738
    %v745 = vsel %vm703, %v723, 0
    %747 = vmatpush.bf16.msra.mxu0 0
    %748 = vmatpush.bf16.msra.mxu0 0
    %749 = vmatpush.bf16.msra.mxu0 0
    %750 = vmatpush.bf16.msra.mxu0 0
    %751 = vmatpush.bf16.msra.mxu0 0
    %752 = vmatpush.bf16.msra.mxu0 0
    %753 = vmatpush.bf16.msra.mxu0 %v741
    %754 = vmatpush.bf16.msra.mxu0 %v740
    %755 = vmatmul.bf16.gmra.mxu0 %v745
    %v756 = vpop.f32.mrf.mxu0
    %v757 = vadd.f32 %v730, %v756
    %v758 = vpop.f32.mrf.mxu0
    %759 = vdwg.mxu0
    %v760 = vsub.f32 0.0, %v757
    %v761 = vmul.f32 %v760, 1.442695
    %v762 = vpow.pop %v761
    %v763 = vadd.f32 %v762, 1.0
    %v764 = vrcp.pop %v763
    %v765 = vmul.f32 %v763, %v764
    %v766 = vsub.f32 1.0, %v765
    %v767 = vmul.f32 %v764, %v766
    %v768 = vadd.f32 %v764, %v767
    %vm769 = vweird.f32 %v763
    %vm770 = vweird.f32 %v764
    %vm771 = vmor %vm769, %vm770
    %v772 = vsel %vm771, %v764, %v768
    %v773 = vand.u32 2147483647, %v763
    %vm774 = vcmp.eq.f32.partialorder %v773, 8.507059e+37
    %v775 = vand.u32 %v763, 2147483648
    %v776 = vor.u32 1.1754944e-38, %v775
    %v777 = vsel %vm774, %v776, %v772
    %v778 = vmul.f32 1.0, %v777
    %779 = vst [vmem:[#allocation2] sm:$0x3] %v778
    // Predicated region
    $region30: #{tpu_custom_call.1} parent=1 // pred_check
      _
    $region31: #{tpu_custom_call.1} parent=1 // pred_check_branch
      %781 = sbr.rel (0) target = $region33
    $region32: #{tpu_custom_call.1} parent=1 // pred_region
      %783 = vsyncadd [#allocation3], 0
      %s785 = sshll.u32 [#allocation2], 4
      %s786 = int_to_ptr.vmem [resolvable:$true] %s785
      %s787 = sshll.u32 %s7, 4
      %s788 = int_to_ptr.hbm [resolvable:$true] %s787
      %790 = dma.vmem_to_hbm [thread:$0]  %s786, 32, %s788, [#allocation3]
    $region33: #{tpu_custom_call.1} parent=1 // pred_fallthru
      _
    // Predicated region
    $region34: #{tpu_custom_call.1} parent=1 // pred_check
      _
    $region35: #{tpu_custom_call.1} parent=1 // pred_check_branch
      %792 = sbr.rel (0) target = $region37
    $region36: #{tpu_custom_call.1} parent=1 // pred_region
      %794 = dma.done [#allocation3], 32
    $region37: #{tpu_custom_call.1} parent=1 // pred_fallthru
      _
    %795 = vsyncpa [#allocation3], 1

</llo_original>
